<compile_context>
chip_gen: v5e
topology: v5e:2x2
jax: 0.10.0
libtpu: 0.0.40
codegen_flags: <defaults>
</compile_context>

<pallas_src>
import functools

import jax
import jax.numpy as jnp
from jax.experimental import pallas as pl
from jax.experimental.pallas import tpu as pltpu

# Hyperparameters implied by the module's __init__ (args.n_qubits * args.m).
N_QUBITS = 4
M = 8
IN_FEATURES = N_QUBITS * M   # 32
BATCH = 8

LANES = 128
TARGET_PACKED_ROWS = 8192    # 8192 packed rows x 128 lanes x 4 B = 4 MiB per grid step


def classifier_kernel(x_ref, w_ref, b_ref, o_ref, *, pack, feat):
    # x_ref: (TB, pack*feat) VMEM  -- lane-dense packed batch tile
    # w_ref: (1,  pack*feat) VMEM  -- weight tiled `pack` times along lanes
    # b_ref: (1, 1) SMEM           -- bias scalar
    # o_ref: (TB, pack) VMEM       -- one logit/probability per packed lane segment
    x = x_ref[...]
    w = w_ref[...]                                    # sublane-broadcasts for free
    prod = (x * w).astype(jnp.float32)                # full-lane VPU multiply, f32 accum
    # Segmented lane reduction (XLU): one 32-lane sum per packed row segment.
    cols = [
        jnp.sum(prod[:, k * feat:(k + 1) * feat], axis=-1, keepdims=True)
        for k in range(pack)
    ]
    logits = cols[0] if pack == 1 else jnp.concatenate(cols, axis=-1)
    logits = logits + b_ref[0, 0]                     # (TB, pack) f32, scalar bias add
    # Exact sigmoid via a single EUP tanh: sigmoid(z) = 0.5 * (1 + tanh(z / 2)).
    o_ref[...] = (0.5 * (1.0 + jnp.tanh(0.5 * logits))).astype(o_ref.dtype)


def classifier_forward(x, weight, bias, *, block_rows=None):
    """x: (B, F), weight: (1, F), bias: (1,) -> sigmoid(x @ weight.T + bias) as (B, 1) f32."""
    B, F = x.shape
    assert weight.shape == (1, F)
    assert LANES % F == 0, "in_features must divide 128 for the packed lane layout"
    pack = LANES // F                                  # 4 for F = 32

    rows = pl.cdiv(B, pack)                            # packed rows needed
    if block_rows is None:
        block_rows = rows if rows <= TARGET_PACKED_ROWS else TARGET_PACKED_ROWS
    if rows > block_rows:
        block_rows = max(8, (block_rows // 8) * 8)     # sublane-aligned when tiling
    n_tiles = pl.cdiv(rows, block_rows)
    rows_padded = n_tiles * block_rows
    b_padded = rows_padded * pack

    if b_padded != B:
        x = jnp.pad(x, ((0, b_padded - B), (0, 0)))    # padded rows sliced off below
    x_packed = x.reshape(rows_padded, pack * F)        # contiguous reshape -> lane-dense
    w_tiled = jnp.tile(weight.reshape(1, F), (1, pack)).astype(x.dtype)
    bias2d = bias.reshape(1, 1).astype(jnp.float32)

    # Explicit VMEM budget: double-buffered x tile + output tile + slack.
    tile_in = block_rows * pack * F * x.dtype.itemsize
    tile_out = block_rows * pack * 4
    vmem_limit = min(max(2 * (tile_in + tile_out) + (1 << 20), 4 << 20), 32 << 20)

    out = pl.pallas_call(
        functools.partial(classifier_kernel, pack=pack, feat=F),
        out_shape=jax.ShapeDtypeStruct((rows_padded, pack), jnp.float32),
        grid_spec=pltpu.PrefetchScalarGridSpec(
            num_scalar_prefetch=0,
            grid=(n_tiles,),
            in_specs=[
                pl.BlockSpec((block_rows, pack * F), lambda i: (i, 0)),   # packed x tile
                pl.BlockSpec((1, pack * F), lambda i: (0, 0)),            # tiled weight
                pl.BlockSpec(memory_space=pltpu.MemorySpace.SMEM),        # bias scalar
            ],
            out_specs=pl.BlockSpec((block_rows, pack), lambda i: (i, 0)),
        ),
        compiler_params=pltpu.CompilerParams(
            dimension_semantics=("parallel",),    # shards batch tiles over v7x's 2 TCs
            vmem_limit_bytes=vmem_limit,
        ),
    )(x_packed, w_tiled, bias2d)

    return out.reshape(b_padded, 1)[:B]


if __name__ == "__main__":
    key = jax.random.PRNGKey(0)
    kx, kw, kb = jax.random.split(key, 3)

    # Deterministic synthetic parameters (nn.Linear-style uniform init bound).
    bound = 1.0 / jnp.sqrt(jnp.float32(IN_FEATURES))
    x = jax.random.normal(kx, (BATCH, IN_FEATURES), dtype=jnp.float32)
    weight = jax.random.uniform(kw, (1, IN_FEATURES), dtype=jnp.float32,
                                minval=-bound, maxval=bound)
    bias = jax.random.uniform(kb, (1,), dtype=jnp.float32,
                              minval=-bound, maxval=bound)

    # Main (module-sized) case: B=8 -> single (2, 128) packed tile.
    out = jax.block_until_ready(classifier_forward(x, weight, bias))
    ref = jax.nn.sigmoid(x @ weight.T + bias)
    assert out.shape == (BATCH, 1)
    assert jnp.allclose(out, ref, atol=1e-5, rtol=1e-5)

    # Multi-tile + padded-batch path (exercises the grid and the batch padding).
    x2 = jax.random.normal(kx, (100, IN_FEATURES), dtype=jnp.float32)
    out2 = jax.block_until_ready(classifier_forward(x2, weight, bias, block_rows=8))
    ref2 = jax.nn.sigmoid(x2 @ weight.T + bias)
    assert out2.shape == (100, 1)
    assert jnp.allclose(out2, ref2, atol=1e-5, rtol=1e-5)

    print("KERNEL_OK")
</pallas_src>

<mosaic_0001>
module attributes {stable_mosaic.version = 11 : i64} {
  func.func @classifier_kernel(%arg0: i32, %arg1: memref<2x128xf32, #tpu.memory_space<vmem>>, %arg2: memref<1x128xf32, #tpu.memory_space<vmem>>, %arg3: memref<1x1xf32, #tpu.memory_space<smem>>, %arg4: memref<2x4xf32, #tpu.memory_space<vmem>>) attributes {dimension_semantics = [#tpu.dimension_semantics<parallel>], iteration_bounds = array<i64: 1>, scalar_prefetch = 0 : i64, scratch_operands = 0 : i64, tpu.core_type = #tpu.core_type<tc>, window_params = [{transform_indices = @transform_0, window_bounds = array<i64: 2, 128>}, {pipeline_mode = #tpu.pipeline_mode<synchronous>, transform_indices = @transform_1, window_bounds = array<i64: 1, 128>}, {transform_indices = @transform_2, window_bounds = array<i64: 1, 1>}, {transform_indices = @transform_3, window_bounds = array<i64: 2, 4>}]} {
    %c0 = arith.constant 0 : index
    %c0_0 = arith.constant 0 : index
    %0 = vector.load %arg1[%c0, %c0_0] : memref<2x128xf32, #tpu.memory_space<vmem>>, vector<2x128xf32>
    %c0_1 = arith.constant 0 : index
    %c0_2 = arith.constant 0 : index
    %1 = vector.load %arg2[%c0_1, %c0_2] : memref<1x128xf32, #tpu.memory_space<vmem>>, vector<1x128xf32>
    %2 = vector.broadcast %1 : vector<1x128xf32> to vector<2x128xf32>
    %3 = arith.mulf %0, %2 : vector<2x128xf32>
    %4 = vector.extract_strided_slice %3 {offsets = [0, 0], sizes = [2, 32], strides = [1, 1]} : vector<2x128xf32> to vector<2x32xf32>
    %cst = arith.constant dense<0.000000e+00> : vector<2xf32>
    %5 = vector.multi_reduction <add>, %4, %cst [1] : vector<2x32xf32> to vector<2xf32>
    %6 = vector.shape_cast %5 : vector<2xf32> to vector<2x1xf32>
    %7 = vector.extract_strided_slice %3 {offsets = [0, 32], sizes = [2, 32], strides = [1, 1]} : vector<2x128xf32> to vector<2x32xf32>
    %cst_3 = arith.constant dense<0.000000e+00> : vector<2xf32>
    %8 = vector.multi_reduction <add>, %7, %cst_3 [1] : vector<2x32xf32> to vector<2xf32>
    %9 = vector.shape_cast %8 : vector<2xf32> to vector<2x1xf32>
    %10 = vector.extract_strided_slice %3 {offsets = [0, 64], sizes = [2, 32], strides = [1, 1]} : vector<2x128xf32> to vector<2x32xf32>
    %cst_4 = arith.constant dense<0.000000e+00> : vector<2xf32>
    %11 = vector.multi_reduction <add>, %10, %cst_4 [1] : vector<2x32xf32> to vector<2xf32>
    %12 = vector.shape_cast %11 : vector<2xf32> to vector<2x1xf32>
    %13 = vector.extract_strided_slice %3 {offsets = [0, 96], sizes = [2, 32], strides = [1, 1]} : vector<2x128xf32> to vector<2x32xf32>
    %cst_5 = arith.constant dense<0.000000e+00> : vector<2xf32>
    %14 = vector.multi_reduction <add>, %13, %cst_5 [1] : vector<2x32xf32> to vector<2xf32>
    %15 = vector.shape_cast %14 : vector<2xf32> to vector<2x1xf32>
    %16 = tpu.concatenate %6, %9, %12, %15 in 1 : vector<2x1xf32>, vector<2x1xf32>, vector<2x1xf32>, vector<2x1xf32> -> vector<2x4xf32>
    %c0_6 = arith.constant 0 : index
    %c0_7 = arith.constant 0 : index
    %17 = memref.load %arg3[%c0_6, %c0_7] : memref<1x1xf32, #tpu.memory_space<smem>>
    %18 = vector.broadcast %17 : f32 to vector<2x4xf32>
    %19 = arith.addf %16, %18 : vector<2x4xf32>
    %cst_8 = arith.constant 5.000000e-01 : f32
    %20 = vector.broadcast %cst_8 : f32 to vector<2x4xf32>
    %21 = arith.mulf %20, %19 : vector<2x4xf32>
    %22 = math.tanh %21 : vector<2x4xf32>
    %cst_9 = arith.constant 1.000000e+00 : f32
    %23 = vector.broadcast %cst_9 : f32 to vector<2x4xf32>
    %24 = arith.addf %23, %22 : vector<2x4xf32>
    %cst_10 = arith.constant 5.000000e-01 : f32
    %25 = vector.broadcast %cst_10 : f32 to vector<2x4xf32>
    %26 = arith.mulf %25, %24 : vector<2x4xf32>
    %c0_11 = arith.constant 0 : index
    %c0_12 = arith.constant 0 : index
    %27 = vector.load %arg4[%c0_11, %c0_12] : memref<2x4xf32, #tpu.memory_space<vmem>>, vector<2x4xf32>
    tpu.vector_store %arg4[%c0_11, %c0_12], %26 {strides = array<i32>} : memref<2x4xf32, #tpu.memory_space<vmem>>, vector<2x4xf32>,
    return
  }
  func.func @transform_0(%arg0: i32) -> (i32, i32) {
    %c0_i32 = arith.constant 0 : i32
    %c0_i32_0 = arith.constant 0 : i32
    return %arg0, %c0_i32 : i32, i32
  }
  func.func @transform_1(%arg0: i32) -> (i32, i32) {
    %c0_i32 = arith.constant 0 : i32
    %c0_i32_0 = arith.constant 0 : i32
    %c0_i32_1 = arith.constant 0 : i32
    return %c0_i32, %c0_i32_0 : i32, i32
  }
  func.func @transform_2(%arg0: i32) -> (i32, i32) {
    %c0_i32 = arith.constant 0 : i32
    %c0_i32_0 = arith.constant 0 : i32
    %c0_i32_1 = arith.constant 0 : i32
    return %c0_i32, %c0_i32_0 : i32, i32
  }
  func.func @transform_3(%arg0: i32) -> (i32, i32) {
    %c0_i32 = arith.constant 0 : i32
    %c0_i32_0 = arith.constant 0 : i32
    return %arg0, %c0_i32 : i32, i32
  }
}

</mosaic_0001>

<llo_original>
// kernel: tpu_custom_call.1
$region0: #{tpu_custom_call.1}
  #allocation0 [shape = 'u32[]', space=smem, size = 0x4, offset = 0x4, fixed_abs, tag = 'smem constant byte address 0x4 - core index']
  #allocation1 [shape = 'u32[72,128]{1,0:T(1,128)}', space=vmem, size = 0x9000, scoped, tag = 'internal scratch']
  #allocation2 [shape = 'f32[1,1]{1,0:T(1,128)S(6)}', space=smem, size = 0x200, scoped, tag = 'scoped memory for tpu_custom_call.1']
  %s0 = inlined_call_operand.vmem [shape: f32[2,128], index: 0, kind: input, shape index: {}]
  %s1 = inlined_call_operand.hbm [shape: f32[1,128], index: 1, kind: input, shape index: {}]
  %s2 = inlined_call_operand.<no memory space> [shape: f32[1,1], index: 2, kind: input, shape index: {}]
  %s3 = inlined_call_operand.hbm [shape: f32[2,4], index: 3, kind: output, shape index: {}]
  %s4 = sld [smem:[#allocation0]]
  $region26: #{tpu_custom_call.1} parent=0
    _
  %s6 = ssub.s32 1, %s4
  %s7 = scalar_select 0, %s6, %s4
  %8 = sst [smem:[#allocation2]] %s2
  $region1: #{tpu_custom_call.1} parent=0
    #allocation3 [shape = 'u8[512]{0}', space=vmem, size = 0x400, scoped, tag = 'input window, operand 1, single buffered']
    #allocation4 [shape = 's32[1]{0}', space=sflag, size = 0x4, scoped, tag = 'scoped memory for tpu_custom_call.1']
    #allocation5 [shape = 's32[1]{0}', space=sflag, size = 0x4, scoped, tag = 'scoped memory for tpu_custom_call.1']
    #allocation6 [shape = 'u8[1024]{0}', space=vmem, size = 0x400, scoped, tag = 'output window, operand 0, single buffered']
    %9 = vsyncpa [#allocation4], 0
    %10 = vsyncpa [#allocation5], 0
    // Predicated region
    $region2: #{tpu_custom_call.1} parent=1 // pred_check
      _
    $region3: #{tpu_custom_call.1} parent=1 // pred_check_branch
      %12 = sbr.rel (0) target = $region5
    $region4: #{tpu_custom_call.1} parent=1 // pred_region
      _
    $region5: #{tpu_custom_call.1} parent=1 // pred_fallthru
      _
    // Predicated region
    $region6: #{tpu_custom_call.1} parent=1 // pred_check
      _
    $region7: #{tpu_custom_call.1} parent=1 // pred_check_branch
      %14 = sbr.rel (0) target = $region9
    $region8: #{tpu_custom_call.1} parent=1 // pred_region
      %16 = vsyncadd [#allocation4], 0
      %s18 = sshll.u32 %s1, 4
      %s19 = int_to_ptr.hbm [resolvable:$true] %s18
      %s20 = sshll.u32 [#allocation3], 4
      %s21 = int_to_ptr.vmem [resolvable:$true] %s20
      %23 = dma.hbm_to_vmem [thread:$0]  %s19, 16, %s21, [#allocation4]
    $region9: #{tpu_custom_call.1} parent=1 // pred_fallthru
      _
    // Predicated region
    $region10: #{tpu_custom_call.1} parent=1 // pred_check
      _
    $region11: #{tpu_custom_call.1} parent=1 // pred_check_branch
      %25 = sbr.rel (0) target = $region13
    $region12: #{tpu_custom_call.1} parent=1 // pred_region
      _
    $region13: #{tpu_custom_call.1} parent=1 // pred_fallthru
      _
    // Predicated region
    $region14: #{tpu_custom_call.1} parent=1 // pred_check
      _
    $region15: #{tpu_custom_call.1} parent=1 // pred_check_branch
      %27 = sbr.rel (0) target = $region17
    $region16: #{tpu_custom_call.1} parent=1 // pred_region
      %29 = dma.done [#allocation4], 16
    $region17: #{tpu_custom_call.1} parent=1 // pred_fallthru
      _
    %v30 = vld [vmem:[%s0] sm:$0x3]
    %v31 = vld [vmem:[#allocation3] sm:$0x1]
    %v33 = vperm.slane %v31, 0
    %v35 = vmul.f32 %v30, %v33
    %vm36 = vcmask 254976
    %v37 = vsel %vm36, %v35, 0.0
    %38 = vadd.xlane.f32.xlu0 %v37
    %v39 = vpop.xlane.xlu0 %38
    %41 = vrot.lane.b32.xlu0 %v35, 96
    %v42 = vpop.permute.xlu0 %41
    %v44 = vsel %vm36, %v42, 0.0
    %45 = vadd.xlane.f32.xlu0 %v44
    %v46 = vpop.xlane.xlu0 %45
    %47 = vrot.lane.b32.xlu0 %v35, 64
    %v48 = vpop.permute.xlu0 %47
    %v50 = vsel %vm36, %v48, 0.0
    %51 = vadd.xlane.f32.xlu0 %v50
    %v52 = vpop.xlane.xlu0 %51
    %53 = vrot.lane.b32.xlu0 %v35, 32
    %v54 = vpop.permute.xlu0 %53
    %v56 = vsel %vm36, %v54, 0.0
    %57 = vadd.xlane.f32.xlu0 %v56
    %v58 = vpop.xlane.xlu0 %57
    %vm59 = vcmask 7168
    %v60 = vsel %vm59, %v39, %v46
    %vm61 = vcmask 15360
    %v62 = vsel %vm61, %v60, %v52
    %vm63 = vcmask 23552
    %v64 = vsel %vm63, %v62, %v58
    %s65 = sld [smem:[#allocation2]]
    %v66 = vstv %s65
    %v67 = vadd.f32 %v64, %v66
    %v68 = vmul.f32 %v67, 0.5
    %v69 = vtanh.pop %v68
    %v70 = vadd.f32 %v69, 1.0
    %v71 = vmul.f32 %v70, 0.5
    %vm72 = vcmask 25600
    %73 = vst.msk [vmem:[#allocation6] sm:$0x3] %vm72, %v71
    // Predicated region
    $region18: #{tpu_custom_call.1} parent=1 // pred_check
      _
    $region19: #{tpu_custom_call.1} parent=1 // pred_check_branch
      %75 = sbr.rel (0) target = $region21
    $region20: #{tpu_custom_call.1} parent=1 // pred_region
      %77 = vsyncadd [#allocation5], 0
      %s79 = sshll.u32 [#allocation6], 4
      %s80 = int_to_ptr.vmem [resolvable:$true] %s79
      %s81 = sshll.u32 %s3, 4
      %s82 = int_to_ptr.hbm [resolvable:$true] %s81
      %84 = dma.vmem_to_hbm [thread:$0]  %s80, 32, %s82, [#allocation5]
    $region21: #{tpu_custom_call.1} parent=1 // pred_fallthru
      _
    // Predicated region
    $region22: #{tpu_custom_call.1} parent=1 // pred_check
      _
    $region23: #{tpu_custom_call.1} parent=1 // pred_check_branch
      %86 = sbr.rel (0) target = $region25
    $region24: #{tpu_custom_call.1} parent=1 // pred_region
      %88 = dma.done [#allocation5], 32
    $region25: #{tpu_custom_call.1} parent=1 // pred_fallthru
      _
    %89 = vsyncpa [#allocation4], 1
    %90 = vsyncpa [#allocation5], 1

</llo_original>
